<compile_context>
chip_gen: v5e
topology: v5e:2x2
jax: 0.10.0
libtpu: 0.0.40
codegen_flags: <defaults>
</compile_context>

<pallas_src>
from functools import partial

import jax
import jax.numpy as jnp
from jax.experimental import pallas as pl
from jax.experimental.pallas import tpu as pltpu

LANE = 128  # vreg lane width


def _round_up(x, m):
    return (x + m - 1) // m * m


def _mlp_kernel(x_ref,
                w1_ref, b1_ref,
                w2_ref, b2_ref,
                w3_ref, b3_ref,
                w4_ref, b4_ref,
                o_ref):
    """Fused fc1->relu->fc2->relu->fc3->relu->fc4 on one batch tile.

    Dots run on the MXU with f32 accumulation.  Bias-add / ReLU stay in f32
    (v5e's VPU has no bf16 ALUs); activations are cast back to the weight
    dtype only to feed the next matmul.
    """
    w_dtype = w1_ref.dtype
    x = x_ref[...]  # already in weight dtype (cast once in the wrapper)

    h = jnp.dot(x, w1_ref[...], preferred_element_type=jnp.float32)
    h = jnp.maximum(h + b1_ref[...], 0.0)

    h = jnp.dot(h.astype(w_dtype), w2_ref[...], preferred_element_type=jnp.float32)
    h = jnp.maximum(h + b2_ref[...], 0.0)

    h = jnp.dot(h.astype(w_dtype), w3_ref[...], preferred_element_type=jnp.float32)
    h = jnp.maximum(h + b3_ref[...], 0.0)

    out = jnp.dot(h.astype(w_dtype), w4_ref[...], preferred_element_type=jnp.float32)
    o_ref[...] = (out + b4_ref[...]).astype(o_ref.dtype)
    # TODO(synk): optional fp8 weight path for v7x inference (per-channel
    # scales folded into the f32 accumulator), gated behind an accuracy flag.


def init_params(key, input_size, emb_size, num_class):
    """Deterministic init mimicking torch.nn.Linear (stored as [in, out])."""
    ks = jax.random.split(key, 8)

    def linear(kw, kb, fan_in, fan_out):
        bound = 1.0 / jnp.sqrt(jnp.float32(fan_in))
        w = jax.random.uniform(kw, (fan_in, fan_out), jnp.float32, -bound, bound)
        b = jax.random.uniform(kb, (1, fan_out), jnp.float32, -bound, bound)
        return w, b

    w1, b1 = linear(ks[0], ks[1], input_size, emb_size)
    w2, b2 = linear(ks[2], ks[3], emb_size, emb_size)
    w3, b3 = linear(ks[4], ks[5], emb_size, emb_size)
    w4, b4 = linear(ks[6], ks[7], emb_size, num_class)
    return {"w1": w1, "b1": b1, "w2": w2, "b2": b2,
            "w3": w3, "b3": b3, "w4": w4, "b4": b4}


def pad_params(params, *, weight_dtype=jnp.bfloat16):
    """Zero-pad weights/biases to lane-dense (multiple-of-128) shapes.

    Do this ONCE at init time (not per forward call).  Zero padding keeps the
    result exact: padded input lanes are zero, padded hidden lanes get bias 0
    -> relu(0)=0 -> contribute nothing downstream.  Biases stay f32 so the
    elementwise chain runs in f32 on every TPU generation.

    Default weight dtype is bf16 (v5e/v6e/v7x MXU native; halves weight VMEM
    and input DMA bytes); pass weight_dtype=jnp.float32 for exact math.
    """
    def pad_w(w):
        r = _round_up(w.shape[0], LANE)
        c = _round_up(w.shape[1], LANE)
        out = jnp.zeros((r, c), jnp.float32).at[:w.shape[0], :w.shape[1]].set(w)
        return out.astype(weight_dtype)

    def pad_b(b):
        c = _round_up(b.shape[1], LANE)
        return jnp.zeros((1, c), jnp.float32).at[:, :b.shape[1]].set(b)

    return {
        "w1": pad_w(params["w1"]), "b1": pad_b(params["b1"]),
        "w2": pad_w(params["w2"]), "b2": pad_b(params["b2"]),
        "w3": pad_w(params["w3"]), "b3": pad_b(params["b3"]),
        "w4": pad_w(params["w4"]), "b4": pad_b(params["b4"]),
    }


def _vmem_capacity_bytes():
    """Physical per-core VMEM; falls back to the smallest (v7x: 64 MiB)."""
    try:
        return int(pltpu.get_tpu_info().vmem_capacity_bytes)
    except Exception:
        return 64 * 1024 * 1024


@partial(jax.jit, static_argnames=("num_class", "tile_b"))
def simple_nn_forward(x, padded_params, *, num_class, tile_b=None):
    """Run the fused, batch-tiled MLP kernel.

    x:             [B, input_size] float32 (or already in the weight dtype)
    padded_params: output of pad_params() (lane-dense [in,out] weights)
    Returns        [B, num_class] float32
    """
    p = padded_params
    w_dtype = p["w1"].dtype
    w_bytes = w_dtype.itemsize

    B, in_size = x.shape
    in_p = p["w1"].shape[0]
    emb_p = p["w2"].shape[0]
    nc_p = p["w4"].shape[1]

    # --- per-chip sizing -----------------------------------------------
    vmem_cap = _vmem_capacity_bytes()

    # Sublane granule follows operand packing: f32->8, bf16->16, fp8/int8->32.
    granule = {4: 8, 2: 16, 1: 32}.get(w_bytes, 8)

    # Resident weights+biases are single-buffered (Buffered(1)).
    weight_bytes = sum(p[k].size * p[k].dtype.itemsize
                       for k in ("w1", "w2", "w3", "w4", "b1", "b2", "b3", "b4"))
    # Per-batch-row footprint: double-buffered x tile + out tile, plus ~2
    # f32 intermediate activation slabs of width emb_p.
    per_row = (in_p * w_bytes + nc_p * 4) * 2 + 2 * emb_p * 4

    if tile_b is None:
        # 128 MiB chips (v5e/v6e): big tiles amortize the ~0.35us/step
        # overhead; 64 MiB-per-TC v7x: stay smaller.
        tile_b = 2048 if vmem_cap >= 96 * 1024 * 1024 else 512
    # Cap the tile so resident weights + tiles fit comfortably in VMEM.
    avail = max(vmem_cap * 3 // 4 - weight_bytes, 1 << 20)
    tile_cap = max(granule, (avail // per_row) // granule * granule)
    tile_b = min(tile_b, tile_cap)

    # --- balanced batch tiling ------------------------------------------
    n_tiles = pl.cdiv(B, tile_b)
    if n_tiles == 1 and B >= 256:
        n_tiles = 2  # give v7x's second TensorCore work via "parallel" axis
    tb = _round_up(pl.cdiv(B, n_tiles), granule)
    b_pad = _round_up(B, tb)
    grid = (b_pad // tb,)

    # --- derived VMEM budget ----------------------------------------------
    vmem_limit = weight_bytes + tb * per_row + (8 << 20)       # +headroom
    vmem_limit = int(min(max(vmem_limit, 32 << 20), vmem_cap * 9 // 10))

    # --- input padding (elided when already dense/aligned) ----------------
    if b_pad == B and in_p == in_size and x.dtype == w_dtype:
        x_p = x
    else:
        x_p = jnp.zeros((b_pad, in_p), w_dtype).at[:B, :in_size].set(
            x.astype(w_dtype))

    def resident(shape):
        # Whole-array block, same block every grid step -> stays in VMEM.
        # Buffered(1): no second pipeline buffer for never-refetched operands.
        return pl.BlockSpec(shape, lambda i: (0, 0), pipeline_mode=pl.Buffered(1))

    out_p = pl.pallas_call(
        _mlp_kernel,
        out_shape=jax.ShapeDtypeStruct((b_pad, nc_p), jnp.float32),
        grid=grid,
        in_specs=[
            # Batch-tiled input (default double-buffering; sweep Buffered(3)
            # if xprof shows exposed x DMA at large tb).
            pl.BlockSpec((tb, in_p), lambda i: (i, 0)),
            resident(p["w1"].shape), resident(p["b1"].shape),
            resident(p["w2"].shape), resident(p["b2"].shape),
            resident(p["w3"].shape), resident(p["b3"].shape),
            resident(p["w4"].shape), resident(p["b4"].shape),
        ],
        out_specs=pl.BlockSpec((tb, nc_p), lambda i: (i, 0)),
        compiler_params=pltpu.CompilerParams(
            dimension_semantics=("parallel",),   # v7x: shard batch over 2 TCs
            vmem_limit_bytes=vmem_limit,
        ),
    )(x_p, p["w1"], p["b1"], p["w2"], p["b2"],
      p["w3"], p["b3"], p["w4"], p["b4"])

    if b_pad == B and nc_p == num_class:
        return out_p
    return out_p[:B, :num_class]


def reference_forward(x, p):
    h = jnp.maximum(x @ p["w1"] + p["b1"], 0.0)
    h = jnp.maximum(h @ p["w2"] + p["b2"], 0.0)
    h = jnp.maximum(h @ p["w3"] + p["b3"], 0.0)
    return h @ p["w4"] + p["b4"]


if __name__ == "__main__":
    key = jax.random.PRNGKey(0)
    k_x, k_p = jax.random.split(key)

    batch = 8
    input_size = 32
    emb_size = 32
    num_class = 10

    x = jax.random.normal(k_x, (batch, input_size), jnp.float32)
    params = init_params(k_p, input_size, emb_size, num_class)
    ref = reference_forward(x, params)

    # f32 weight-resident path (exact vs reference).
    p_f32 = pad_params(params, weight_dtype=jnp.float32)
    out = jax.block_until_ready(simple_nn_forward(x, p_f32, num_class=num_class))
    assert out.shape == (batch, num_class)
    assert jnp.allclose(out, ref, atol=1e-4, rtol=1e-4)

    # Non-multiple-of-8 batch exercises the batch-padding path.
    x_small = x[:5]
    out_small = jax.block_until_ready(
        simple_nn_forward(x_small, p_f32, num_class=num_class))
    assert out_small.shape == (5, num_class)
    assert jnp.allclose(out_small, ref[:5], atol=1e-4, rtol=1e-4)

    # bf16 operand / f32 accumulation path (default deployed path).
    p_bf16 = pad_params(params)  # weight_dtype defaults to bf16
    out_bf16 = jax.block_until_ready(
        simple_nn_forward(x, p_bf16, num_class=num_class))
    assert out_bf16.shape == (batch, num_class)
    assert jnp.allclose(out_bf16, ref, atol=1e-1, rtol=5e-2)

    print("KERNEL_OK")
</pallas_src>

<mosaic_0001>
module attributes {stable_mosaic.version = 11 : i64} {
  func.func @_mlp_kernel(%arg0: i32, %arg1: memref<8x128xf32, #tpu.memory_space<vmem>>, %arg2: memref<128x128xf32, #tpu.memory_space<vmem>>, %arg3: memref<1x128xf32, #tpu.memory_space<vmem>>, %arg4: memref<128x128xf32, #tpu.memory_space<vmem>>, %arg5: memref<1x128xf32, #tpu.memory_space<vmem>>, %arg6: memref<128x128xf32, #tpu.memory_space<vmem>>, %arg7: memref<1x128xf32, #tpu.memory_space<vmem>>, %arg8: memref<128x128xf32, #tpu.memory_space<vmem>>, %arg9: memref<1x128xf32, #tpu.memory_space<vmem>>, %arg10: memref<8x128xf32, #tpu.memory_space<vmem>>) attributes {dimension_semantics = [#tpu.dimension_semantics<parallel>], iteration_bounds = array<i64: 1>, scalar_prefetch = 0 : i64, scratch_operands = 0 : i64, tpu.core_type = #tpu.core_type<tc>, window_params = [{transform_indices = @transform_0, window_bounds = array<i64: 8, 128>}, {pipeline_mode = #tpu.pipeline_mode<synchronous>, transform_indices = @transform_1, window_bounds = array<i64: 128, 128>}, {pipeline_mode = #tpu.pipeline_mode<synchronous>, transform_indices = @transform_2, window_bounds = array<i64: 1, 128>}, {pipeline_mode = #tpu.pipeline_mode<synchronous>, transform_indices = @transform_3, window_bounds = array<i64: 128, 128>}, {pipeline_mode = #tpu.pipeline_mode<synchronous>, transform_indices = @transform_4, window_bounds = array<i64: 1, 128>}, {pipeline_mode = #tpu.pipeline_mode<synchronous>, transform_indices = @transform_5, window_bounds = array<i64: 128, 128>}, {pipeline_mode = #tpu.pipeline_mode<synchronous>, transform_indices = @transform_6, window_bounds = array<i64: 1, 128>}, {pipeline_mode = #tpu.pipeline_mode<synchronous>, transform_indices = @transform_7, window_bounds = array<i64: 128, 128>}, {pipeline_mode = #tpu.pipeline_mode<synchronous>, transform_indices = @transform_8, window_bounds = array<i64: 1, 128>}, {transform_indices = @transform_9, window_bounds = array<i64: 8, 128>}]} {
    %c0 = arith.constant 0 : index
    %c0_0 = arith.constant 0 : index
    %0 = vector.load %arg1[%c0, %c0_0] : memref<8x128xf32, #tpu.memory_space<vmem>>, vector<8x128xf32>
    %c0_1 = arith.constant 0 : index
    %c0_2 = arith.constant 0 : index
    %1 = vector.load %arg2[%c0_1, %c0_2] : memref<128x128xf32, #tpu.memory_space<vmem>>, vector<128x128xf32>
    %cst = arith.constant dense<0.000000e+00> : vector<8x128xf32>
    %2 = tpu.matmul %0, %1, %cst {dimension_numbers = #tpu.dot_dimension_numbers<[1], [0], [0], [1], [0, 0, 1, 1], [], []>} : vector<8x128xf32>, vector<128x128xf32>, vector<8x128xf32> -> vector<8x128xf32>
    %c0_3 = arith.constant 0 : index
    %c0_4 = arith.constant 0 : index
    %3 = vector.load %arg3[%c0_3, %c0_4] : memref<1x128xf32, #tpu.memory_space<vmem>>, vector<1x128xf32>
    %4 = vector.broadcast %3 : vector<1x128xf32> to vector<8x128xf32>
    %5 = arith.addf %2, %4 : vector<8x128xf32>
    %cst_5 = arith.constant 0.000000e+00 : f32
    %6 = vector.broadcast %cst_5 : f32 to vector<8x128xf32>
    %7 = arith.maximumf %5, %6 : vector<8x128xf32>
    %c0_6 = arith.constant 0 : index
    %c0_7 = arith.constant 0 : index
    %8 = vector.load %arg4[%c0_6, %c0_7] : memref<128x128xf32, #tpu.memory_space<vmem>>, vector<128x128xf32>
    %cst_8 = arith.constant dense<0.000000e+00> : vector<8x128xf32>
    %9 = tpu.matmul %7, %8, %cst_8 {dimension_numbers = #tpu.dot_dimension_numbers<[1], [0], [0], [1], [0, 0, 1, 1], [], []>} : vector<8x128xf32>, vector<128x128xf32>, vector<8x128xf32> -> vector<8x128xf32>
    %c0_9 = arith.constant 0 : index
    %c0_10 = arith.constant 0 : index
    %10 = vector.load %arg5[%c0_9, %c0_10] : memref<1x128xf32, #tpu.memory_space<vmem>>, vector<1x128xf32>
    %11 = vector.broadcast %10 : vector<1x128xf32> to vector<8x128xf32>
    %12 = arith.addf %9, %11 : vector<8x128xf32>
    %cst_11 = arith.constant 0.000000e+00 : f32
    %13 = vector.broadcast %cst_11 : f32 to vector<8x128xf32>
    %14 = arith.maximumf %12, %13 : vector<8x128xf32>
    %c0_12 = arith.constant 0 : index
    %c0_13 = arith.constant 0 : index
    %15 = vector.load %arg6[%c0_12, %c0_13] : memref<128x128xf32, #tpu.memory_space<vmem>>, vector<128x128xf32>
    %cst_14 = arith.constant dense<0.000000e+00> : vector<8x128xf32>
    %16 = tpu.matmul %14, %15, %cst_14 {dimension_numbers = #tpu.dot_dimension_numbers<[1], [0], [0], [1], [0, 0, 1, 1], [], []>} : vector<8x128xf32>, vector<128x128xf32>, vector<8x128xf32> -> vector<8x128xf32>
    %c0_15 = arith.constant 0 : index
    %c0_16 = arith.constant 0 : index
    %17 = vector.load %arg7[%c0_15, %c0_16] : memref<1x128xf32, #tpu.memory_space<vmem>>, vector<1x128xf32>
    %18 = vector.broadcast %17 : vector<1x128xf32> to vector<8x128xf32>
    %19 = arith.addf %16, %18 : vector<8x128xf32>
    %cst_17 = arith.constant 0.000000e+00 : f32
    %20 = vector.broadcast %cst_17 : f32 to vector<8x128xf32>
    %21 = arith.maximumf %19, %20 : vector<8x128xf32>
    %c0_18 = arith.constant 0 : index
    %c0_19 = arith.constant 0 : index
    %22 = vector.load %arg8[%c0_18, %c0_19] : memref<128x128xf32, #tpu.memory_space<vmem>>, vector<128x128xf32>
    %cst_20 = arith.constant dense<0.000000e+00> : vector<8x128xf32>
    %23 = tpu.matmul %21, %22, %cst_20 {dimension_numbers = #tpu.dot_dimension_numbers<[1], [0], [0], [1], [0, 0, 1, 1], [], []>} : vector<8x128xf32>, vector<128x128xf32>, vector<8x128xf32> -> vector<8x128xf32>
    %c0_21 = arith.constant 0 : index
    %c0_22 = arith.constant 0 : index
    %24 = vector.load %arg9[%c0_21, %c0_22] : memref<1x128xf32, #tpu.memory_space<vmem>>, vector<1x128xf32>
    %25 = vector.broadcast %24 : vector<1x128xf32> to vector<8x128xf32>
    %26 = arith.addf %23, %25 : vector<8x128xf32>
    %c0_23 = arith.constant 0 : index
    %c0_24 = arith.constant 0 : index
    %27 = vector.load %arg10[%c0_23, %c0_24] : memref<8x128xf32, #tpu.memory_space<vmem>>, vector<8x128xf32>
    tpu.vector_store %arg10[%c0_23, %c0_24], %26 {strides = array<i32>} : memref<8x128xf32, #tpu.memory_space<vmem>>, vector<8x128xf32>,
    return
  }
  func.func @transform_0(%arg0: i32) -> (i32, i32) {
    %c0_i32 = arith.constant 0 : i32
    %c0_i32_0 = arith.constant 0 : i32
    return %arg0, %c0_i32 : i32, i32
  }
  func.func @transform_1(%arg0: i32) -> (i32, i32) {
    %c0_i32 = arith.constant 0 : i32
    %c0_i32_0 = arith.constant 0 : i32
    %c0_i32_1 = arith.constant 0 : i32
    return %c0_i32, %c0_i32_0 : i32, i32
  }
  func.func @transform_2(%arg0: i32) -> (i32, i32) {
    %c0_i32 = arith.constant 0 : i32
    %c0_i32_0 = arith.constant 0 : i32
    %c0_i32_1 = arith.constant 0 : i32
    return %c0_i32, %c0_i32_0 : i32, i32
  }
  func.func @transform_3(%arg0: i32) -> (i32, i32) {
    %c0_i32 = arith.constant 0 : i32
    %c0_i32_0 = arith.constant 0 : i32
    %c0_i32_1 = arith.constant 0 : i32
    return %c0_i32, %c0_i32_0 : i32, i32
  }
  func.func @transform_4(%arg0: i32) -> (i32, i32) {
    %c0_i32 = arith.constant 0 : i32
    %c0_i32_0 = arith.constant 0 : i32
    %c0_i32_1 = arith.constant 0 : i32
    return %c0_i32, %c0_i32_0 : i32, i32
  }
  func.func @transform_5(%arg0: i32) -> (i32, i32) {
    %c0_i32 = arith.constant 0 : i32
    %c0_i32_0 = arith.constant 0 : i32
    %c0_i32_1 = arith.constant 0 : i32
    return %c0_i32, %c0_i32_0 : i32, i32
  }
  func.func @transform_6(%arg0: i32) -> (i32, i32) {
    %c0_i32 = arith.constant 0 : i32
    %c0_i32_0 = arith.constant 0 : i32
    %c0_i32_1 = arith.constant 0 : i32
    return %c0_i32, %c0_i32_0 : i32, i32
  }
  func.func @transform_7(%arg0: i32) -> (i32, i32) {
    %c0_i32 = arith.constant 0 : i32
    %c0_i32_0 = arith.constant 0 : i32
    %c0_i32_1 = arith.constant 0 : i32
    return %c0_i32, %c0_i32_0 : i32, i32
  }
  func.func @transform_8(%arg0: i32) -> (i32, i32) {
    %c0_i32 = arith.constant 0 : i32
    %c0_i32_0 = arith.constant 0 : i32
    %c0_i32_1 = arith.constant 0 : i32
    return %c0_i32, %c0_i32_0 : i32, i32
  }
  func.func @transform_9(%arg0: i32) -> (i32, i32) {
    %c0_i32 = arith.constant 0 : i32
    %c0_i32_0 = arith.constant 0 : i32
    return %arg0, %c0_i32 : i32, i32
  }
}

</mosaic_0001>

<llo_original>
// kernel: simple_nn_forward.1
$region0: #{simple_nn_forward.1}
  #allocation0 [shape = 'u32[]', space=smem, size = 0x4, offset = 0x4, fixed_abs, tag = 'smem constant byte address 0x4 - core index']
  #allocation1 [shape = 'u32[72,128]{1,0:T(1,128)}', space=vmem, size = 0x9000, scoped, tag = 'internal scratch']
  %s0 = inlined_call_operand.vmem [shape: f32[8,128], index: 0, kind: input, shape index: {}]
  %s1 = inlined_call_operand.hbm [shape: f32[128,128], index: 1, kind: input, shape index: {}]
  %s2 = inlined_call_operand.vmem [shape: f32[1,128], index: 2, kind: input, shape index: {}]
  %s3 = inlined_call_operand.hbm [shape: f32[128,128], index: 3, kind: input, shape index: {}]
  %s4 = inlined_call_operand.vmem [shape: f32[1,128], index: 4, kind: input, shape index: {}]
  %s5 = inlined_call_operand.hbm [shape: f32[128,128], index: 5, kind: input, shape index: {}]
  %s6 = inlined_call_operand.vmem [shape: f32[1,128], index: 6, kind: input, shape index: {}]
  %s7 = inlined_call_operand.hbm [shape: f32[128,128], index: 7, kind: input, shape index: {}]
  %s8 = inlined_call_operand.vmem [shape: f32[1,128], index: 8, kind: input, shape index: {}]
  %s9 = inlined_call_operand.hbm [shape: f32[8,128], index: 9, kind: output, shape index: {}]
  %s10 = sld [smem:[#allocation0]]
  $region62: #{simple_nn_forward.1} parent=0
    _
  %s12 = ssub.s32 1, %s10
  %s13 = scalar_select 0, %s12, %s10
  $region1: #{simple_nn_forward.1} parent=0
    #allocation2 [shape = 'u8[65536]{0}', space=vmem, size = 0x10000, scoped, tag = 'input window, operand 1, single buffered']
    #allocation3 [shape = 's32[1]{0}', space=sflag, size = 0x4, scoped, tag = 'scoped memory for simple_nn_forward.1']
    #allocation4 [shape = 's32[1]{0}', space=sflag, size = 0x4, scoped, tag = 'scoped memory for simple_nn_forward.1']
    #allocation5 [shape = 'u8[65536]{0}', space=vmem, size = 0x10000, scoped, tag = 'input window, operand 3, single buffered']
    #allocation6 [shape = 's32[1]{0}', space=sflag, size = 0x4, scoped, tag = 'scoped memory for simple_nn_forward.1']
    #allocation7 [shape = 'u8[65536]{0}', space=vmem, size = 0x10000, scoped, tag = 'input window, operand 5, single buffered']
    #allocation8 [shape = 'u8[65536]{0}', space=vmem, size = 0x10000, scoped, tag = 'input window, operand 7, single buffered']
    #allocation9 [shape = 's32[1]{0}', space=sflag, size = 0x4, scoped, tag = 'scoped memory for simple_nn_forward.1']
    #allocation10 [shape = 'u8[4096]{0}', space=vmem, size = 0x1000, scoped, tag = 'output window, operand 0, single buffered']
    %14 = vsyncpa [#allocation3], 0
    %15 = vsyncpa [#allocation6], 0
    %16 = vsyncpa [#allocation9], 0
    %17 = vsyncpa [#allocation4], 0
    // Predicated region
    $region2: #{simple_nn_forward.1} parent=1 // pred_check
      _
    $region3: #{simple_nn_forward.1} parent=1 // pred_check_branch
      %19 = sbr.rel (0) target = $region5
    $region4: #{simple_nn_forward.1} parent=1 // pred_region
      _
    $region5: #{simple_nn_forward.1} parent=1 // pred_fallthru
      _
    // Predicated region
    $region6: #{simple_nn_forward.1} parent=1 // pred_check
      _
    $region7: #{simple_nn_forward.1} parent=1 // pred_check_branch
      %21 = sbr.rel (0) target = $region9
    $region8: #{simple_nn_forward.1} parent=1 // pred_region
      %23 = vsyncadd [#allocation3], 0
      %s24 = sshll.u32 %s1, 4
      %s25 = int_to_ptr.hbm [resolvable:$true] %s24
      %s26 = sshll.u32 [#allocation2], 4
      %s27 = int_to_ptr.vmem [resolvable:$true] %s26
      %32 = dma.hbm_to_vmem [thread:$0]  %s25, 2048, %s27, [#allocation3], 128, 128, 8
    $region9: #{simple_nn_forward.1} parent=1 // pred_fallthru
      _
    // Predicated region
    $region10: #{simple_nn_forward.1} parent=1 // pred_check
      _
    $region11: #{simple_nn_forward.1} parent=1 // pred_check_branch
      %34 = sbr.rel (0) target = $region13
    $region12: #{simple_nn_forward.1} parent=1 // pred_region
      _
    $region13: #{simple_nn_forward.1} parent=1 // pred_fallthru
      _
    // Predicated region
    $region14: #{simple_nn_forward.1} parent=1 // pred_check
      _
    $region15: #{simple_nn_forward.1} parent=1 // pred_check_branch
      %36 = sbr.rel (0) target = $region17
    $region16: #{simple_nn_forward.1} parent=1 // pred_region
      %38 = vsyncadd [#allocation6], 0
      %s39 = sshll.u32 %s3, 4
      %s40 = int_to_ptr.hbm [resolvable:$true] %s39
      %s41 = sshll.u32 [#allocation5], 4
      %s42 = int_to_ptr.vmem [resolvable:$true] %s41
      %47 = dma.hbm_to_vmem [thread:$0]  %s40, 2048, %s42, [#allocation6], 128, 128, 8
    $region17: #{simple_nn_forward.1} parent=1 // pred_fallthru
      _
    // Predicated region
    $region18: #{simple_nn_forward.1} parent=1 // pred_check
      _
    $region19: #{simple_nn_forward.1} parent=1 // pred_check_branch
      %49 = sbr.rel (0) target = $region21
    $region20: #{simple_nn_forward.1} parent=1 // pred_region
      _
    $region21: #{simple_nn_forward.1} parent=1 // pred_fallthru
      _
    // Predicated region
    $region22: #{simple_nn_forward.1} parent=1 // pred_check
      _
    $region23: #{simple_nn_forward.1} parent=1 // pred_check_branch
      %51 = sbr.rel (0) target = $region25
    $region24: #{simple_nn_forward.1} parent=1 // pred_region
      %53 = vsyncadd [#allocation6], 0
      %s54 = sshll.u32 %s5, 4
      %s55 = int_to_ptr.hbm [resolvable:$true] %s54
      %s56 = sshll.u32 [#allocation7], 4
      %s57 = int_to_ptr.vmem [resolvable:$true] %s56
      %62 = dma.hbm_to_vmem [thread:$0]  %s55, 2048, %s57, [#allocation6], 128, 128, 8
    $region25: #{simple_nn_forward.1} parent=1 // pred_fallthru
      _
    // Predicated region
    $region26: #{simple_nn_forward.1} parent=1 // pred_check
      _
    $region27: #{simple_nn_forward.1} parent=1 // pred_check_branch
      %64 = sbr.rel (0) target = $region29
    $region28: #{simple_nn_forward.1} parent=1 // pred_region
      _
    $region29: #{simple_nn_forward.1} parent=1 // pred_fallthru
      _
    // Predicated region
    $region30: #{simple_nn_forward.1} parent=1 // pred_check
      _
    $region31: #{simple_nn_forward.1} parent=1 // pred_check_branch
      %66 = sbr.rel (0) target = $region33
    $region32: #{simple_nn_forward.1} parent=1 // pred_region
      %68 = vsyncadd [#allocation9], 0
      %s69 = sshll.u32 %s7, 4
      %s70 = int_to_ptr.hbm [resolvable:$true] %s69
      %s71 = sshll.u32 [#allocation8], 4
      %s72 = int_to_ptr.vmem [resolvable:$true] %s71
      %77 = dma.hbm_to_vmem [thread:$0]  %s70, 2048, %s72, [#allocation9], 128, 128, 8
    $region33: #{simple_nn_forward.1} parent=1 // pred_fallthru
      _
    // Predicated region
    $region34: #{simple_nn_forward.1} parent=1 // pred_check
      _
    $region35: #{simple_nn_forward.1} parent=1 // pred_check_branch
      %79 = sbr.rel (0) target = $region37
    $region36: #{simple_nn_forward.1} parent=1 // pred_region
      _
    $region37: #{simple_nn_forward.1} parent=1 // pred_fallthru
      _
    // Predicated region
    $region38: #{simple_nn_forward.1} parent=1 // pred_check
      _
    $region39: #{simple_nn_forward.1} parent=1 // pred_check_branch
      %81 = sbr.rel (0) target = $region41
    $region40: #{simple_nn_forward.1} parent=1 // pred_region
      %83 = dma.done [#allocation3], 2048
    $region41: #{simple_nn_forward.1} parent=1 // pred_fallthru
      _
    // Predicated region
    $region42: #{simple_nn_forward.1} parent=1 // pred_check
      _
    $region43: #{simple_nn_forward.1} parent=1 // pred_check_branch
      %85 = sbr.rel (0) target = $region45
    $region44: #{simple_nn_forward.1} parent=1 // pred_region
      %87 = dma.done [#allocation6], 2048
    $region45: #{simple_nn_forward.1} parent=1 // pred_fallthru
      _
    // Predicated region
    $region46: #{simple_nn_forward.1} parent=1 // pred_check
      _
    $region47: #{simple_nn_forward.1} parent=1 // pred_check_branch
      %89 = sbr.rel (0) target = $region49
    $region48: #{simple_nn_forward.1} parent=1 // pred_region
      %91 = dma.done [#allocation6], 2048
    $region49: #{simple_nn_forward.1} parent=1 // pred_fallthru
      _
    // Predicated region
    $region50: #{simple_nn_forward.1} parent=1 // pred_check
      _
    $region51: #{simple_nn_forward.1} parent=1 // pred_check_branch
      %93 = sbr.rel (0) target = $region53
    $region52: #{simple_nn_forward.1} parent=1 // pred_region
      %95 = dma.done [#allocation9], 2048
    $region53: #{simple_nn_forward.1} parent=1 // pred_fallthru
      _
    %v96 = vld [vmem:[%s0] sm:$0xff]
    %v97 = vld [vmem:[#allocation2] sm:$0xff]
    %v98 = vld [vmem:[#allocation2 + $0x8] sm:$0xff]
    %v99 = vld [vmem:[#allocation2 + $0x10] sm:$0xff]
    %v100 = vld [vmem:[#allocation2 + $0x18] sm:$0xff]
    %v101 = vld [vmem:[#allocation2 + $0x20] sm:$0xff]
    %v102 = vld [vmem:[#allocation2 + $0x28] sm:$0xff]
    %v103 = vld [vmem:[#allocation2 + $0x30] sm:$0xff]
    %v104 = vld [vmem:[#allocation2 + $0x38] sm:$0xff]
    %v105 = vld [vmem:[#allocation2 + $0x40] sm:$0xff]
    %v106 = vld [vmem:[#allocation2 + $0x48] sm:$0xff]
    %v107 = vld [vmem:[#allocation2 + $0x50] sm:$0xff]
    %v108 = vld [vmem:[#allocation2 + $0x58] sm:$0xff]
    %v109 = vld [vmem:[#allocation2 + $0x60] sm:$0xff]
    %v110 = vld [vmem:[#allocation2 + $0x68] sm:$0xff]
    %v111 = vld [vmem:[#allocation2 + $0x70] sm:$0xff]
    %v112 = vld [vmem:[#allocation2 + $0x78] sm:$0xff]
    %v113 = vld [vmem:[%s2] sm:$0x1]
    %v115 = vperm.slane %v113, 0
    %117 = vmatpush.msra.mxu0 %v112
    %118 = vmatpush.msra.mxu0 %v111
    %119 = vmatpush.msra.mxu0 %v110
    %120 = vmatpush.msra.mxu0 %v109
    %121 = vmatpush.msra.mxu0 %v108
    %122 = vmatpush.msra.mxu0 %v107
    %123 = vmatpush.msra.mxu0 %v106
    %124 = vmatpush.msra.mxu0 %v105
    %125 = vmatpush.msra.mxu0 %v104
    %126 = vmatpush.msra.mxu0 %v103
    %127 = vmatpush.msra.mxu0 %v102
    %128 = vmatpush.msra.mxu0 %v101
    %129 = vmatpush.msra.mxu0 %v100
    %130 = vmatpush.msra.mxu0 %v99
    %131 = vmatpush.msra.mxu0 %v98
    %132 = vmatpush.msra.mxu0 %v97
    %133 = vmatmul.f32.gmra.mxu0 %v96
    %v134 = vpop.f32.mrf.mxu0
    %v135 = vadd.f32 %v115, %v134
    %136 = vdwg.mxu0
    %v137 = vmax.f32 %v135, 0.0
    %v138 = vld [vmem:[#allocation5] sm:$0xff]
    %v139 = vld [vmem:[#allocation5 + $0x8] sm:$0xff]
    %v140 = vld [vmem:[#allocation5 + $0x10] sm:$0xff]
    %v141 = vld [vmem:[#allocation5 + $0x18] sm:$0xff]
    %v142 = vld [vmem:[#allocation5 + $0x20] sm:$0xff]
    %v143 = vld [vmem:[#allocation5 + $0x28] sm:$0xff]
    %v144 = vld [vmem:[#allocation5 + $0x30] sm:$0xff]
    %v145 = vld [vmem:[#allocation5 + $0x38] sm:$0xff]
    %v146 = vld [vmem:[#allocation5 + $0x40] sm:$0xff]
    %v147 = vld [vmem:[#allocation5 + $0x48] sm:$0xff]
    %v148 = vld [vmem:[#allocation5 + $0x50] sm:$0xff]
    %v149 = vld [vmem:[#allocation5 + $0x58] sm:$0xff]
    %v150 = vld [vmem:[#allocation5 + $0x60] sm:$0xff]
    %v151 = vld [vmem:[#allocation5 + $0x68] sm:$0xff]
    %v152 = vld [vmem:[#allocation5 + $0x70] sm:$0xff]
    %v153 = vld [vmem:[#allocation5 + $0x78] sm:$0xff]
    %v154 = vld [vmem:[%s4] sm:$0x1]
    %v156 = vperm.slane %v154, 0
    %158 = vmatpush.msra.mxu0 %v153
    %159 = vmatpush.msra.mxu0 %v152
    %160 = vmatpush.msra.mxu0 %v151
    %161 = vmatpush.msra.mxu0 %v150
    %162 = vmatpush.msra.mxu0 %v149
    %163 = vmatpush.msra.mxu0 %v148
    %164 = vmatpush.msra.mxu0 %v147
    %165 = vmatpush.msra.mxu0 %v146
    %166 = vmatpush.msra.mxu0 %v145
    %167 = vmatpush.msra.mxu0 %v144
    %168 = vmatpush.msra.mxu0 %v143
    %169 = vmatpush.msra.mxu0 %v142
    %170 = vmatpush.msra.mxu0 %v141
    %171 = vmatpush.msra.mxu0 %v140
    %172 = vmatpush.msra.mxu0 %v139
    %173 = vmatpush.msra.mxu0 %v138
    %174 = vmatmul.f32.gmra.mxu0 %v137
    %v175 = vpop.f32.mrf.mxu0
    %v176 = vadd.f32 %v156, %v175
    %177 = vdwg.mxu0
    %v178 = vmax.f32 %v176, 0.0
    %v179 = vld [vmem:[#allocation7] sm:$0xff]
    %v180 = vld [vmem:[#allocation7 + $0x8] sm:$0xff]
    %v181 = vld [vmem:[#allocation7 + $0x10] sm:$0xff]
    %v182 = vld [vmem:[#allocation7 + $0x18] sm:$0xff]
    %v183 = vld [vmem:[#allocation7 + $0x20] sm:$0xff]
    %v184 = vld [vmem:[#allocation7 + $0x28] sm:$0xff]
    %v185 = vld [vmem:[#allocation7 + $0x30] sm:$0xff]
    %v186 = vld [vmem:[#allocation7 + $0x38] sm:$0xff]
    %v187 = vld [vmem:[#allocation7 + $0x40] sm:$0xff]
    %v188 = vld [vmem:[#allocation7 + $0x48] sm:$0xff]
    %v189 = vld [vmem:[#allocation7 + $0x50] sm:$0xff]
    %v190 = vld [vmem:[#allocation7 + $0x58] sm:$0xff]
    %v191 = vld [vmem:[#allocation7 + $0x60] sm:$0xff]
    %v192 = vld [vmem:[#allocation7 + $0x68] sm:$0xff]
    %v193 = vld [vmem:[#allocation7 + $0x70] sm:$0xff]
    %v194 = vld [vmem:[#allocation7 + $0x78] sm:$0xff]
    %v195 = vld [vmem:[%s6] sm:$0x1]
    %v197 = vperm.slane %v195, 0
    %199 = vmatpush.msra.mxu0 %v194
    %200 = vmatpush.msra.mxu0 %v193
    %201 = vmatpush.msra.mxu0 %v192
    %202 = vmatpush.msra.mxu0 %v191
    %203 = vmatpush.msra.mxu0 %v190
    %204 = vmatpush.msra.mxu0 %v189
    %205 = vmatpush.msra.mxu0 %v188
    %206 = vmatpush.msra.mxu0 %v187
    %207 = vmatpush.msra.mxu0 %v186
    %208 = vmatpush.msra.mxu0 %v185
    %209 = vmatpush.msra.mxu0 %v184
    %210 = vmatpush.msra.mxu0 %v183
    %211 = vmatpush.msra.mxu0 %v182
    %212 = vmatpush.msra.mxu0 %v181
    %213 = vmatpush.msra.mxu0 %v180
    %214 = vmatpush.msra.mxu0 %v179
    %215 = vmatmul.f32.gmra.mxu0 %v178
    %v216 = vpop.f32.mrf.mxu0
    %v217 = vadd.f32 %v197, %v216
    %218 = vdwg.mxu0
    %v219 = vmax.f32 %v217, 0.0
    %v220 = vld [vmem:[#allocation8] sm:$0xff]
    %v221 = vld [vmem:[#allocation8 + $0x8] sm:$0xff]
    %v222 = vld [vmem:[#allocation8 + $0x10] sm:$0xff]
    %v223 = vld [vmem:[#allocation8 + $0x18] sm:$0xff]
    %v224 = vld [vmem:[#allocation8 + $0x20] sm:$0xff]
    %v225 = vld [vmem:[#allocation8 + $0x28] sm:$0xff]
    %v226 = vld [vmem:[#allocation8 + $0x30] sm:$0xff]
    %v227 = vld [vmem:[#allocation8 + $0x38] sm:$0xff]
    %v228 = vld [vmem:[#allocation8 + $0x40] sm:$0xff]
    %v229 = vld [vmem:[#allocation8 + $0x48] sm:$0xff]
    %v230 = vld [vmem:[#allocation8 + $0x50] sm:$0xff]
    %v231 = vld [vmem:[#allocation8 + $0x58] sm:$0xff]
    %v232 = vld [vmem:[#allocation8 + $0x60] sm:$0xff]
    %v233 = vld [vmem:[#allocation8 + $0x68] sm:$0xff]
    %v234 = vld [vmem:[#allocation8 + $0x70] sm:$0xff]
    %v235 = vld [vmem:[#allocation8 + $0x78] sm:$0xff]
    %v236 = vld [vmem:[%s8] sm:$0x1]
    %v238 = vperm.slane %v236, 0
    %240 = vmatpush.msra.mxu0 %v235
    %241 = vmatpush.msra.mxu0 %v234
    %242 = vmatpush.msra.mxu0 %v233
    %243 = vmatpush.msra.mxu0 %v232
    %244 = vmatpush.msra.mxu0 %v231
    %245 = vmatpush.msra.mxu0 %v230
    %246 = vmatpush.msra.mxu0 %v229
    %247 = vmatpush.msra.mxu0 %v228
    %248 = vmatpush.msra.mxu0 %v227
    %249 = vmatpush.msra.mxu0 %v226
    %250 = vmatpush.msra.mxu0 %v225
    %251 = vmatpush.msra.mxu0 %v224
    %252 = vmatpush.msra.mxu0 %v223
    %253 = vmatpush.msra.mxu0 %v222
    %254 = vmatpush.msra.mxu0 %v221
    %255 = vmatpush.msra.mxu0 %v220
    %256 = vmatmul.f32.gmra.mxu0 %v219
    %v257 = vpop.f32.mrf.mxu0
    %v258 = vadd.f32 %v238, %v257
    %259 = vdwg.mxu0
    %260 = vst [vmem:[#allocation10] sm:$0xff] %v258
    // Predicated region
    $region54: #{simple_nn_forward.1} parent=1 // pred_check
      _
    $region55: #{simple_nn_forward.1} parent=1 // pred_check_branch
      %262 = sbr.rel (0) target = $region57
    $region56: #{simple_nn_forward.1} parent=1 // pred_region
      %264 = vsyncadd [#allocation4], 0
      %s266 = sshll.u32 [#allocation10], 4
      %s267 = int_to_ptr.vmem [resolvable:$true] %s266
      %s268 = sshll.u32 %s9, 4
      %s269 = int_to_ptr.hbm [resolvable:$true] %s268
      %271 = dma.vmem_to_hbm [thread:$0]  %s267, 128, %s269, [#allocation4]
    $region57: #{simple_nn_forward.1} parent=1 // pred_fallthru
      _
    // Predicated region
    $region58: #{simple_nn_forward.1} parent=1 // pred_check
      _
    $region59: #{simple_nn_forward.1} parent=1 // pred_check_branch
      %273 = sbr.rel (0) target = $region61
    $region60: #{simple_nn_forward.1} parent=1 // pred_region
      %275 = dma.done [#allocation4], 128
    $region61: #{simple_nn_forward.1} parent=1 // pred_fallthru
      _
    %276 = vsyncpa [#allocation3], 1
    %277 = vsyncpa [#allocation6], 1
    %278 = vsyncpa [#allocation9], 1
    %279 = vsyncpa [#allocation4], 1

</llo_original>
